<compile_context>
chip_gen: v7x
topology: tpu7x:2x2x1
jax: 0.10.0
libtpu: 0.0.40
codegen_flags: <defaults>
</compile_context>

<pallas_src>
import functools

import jax
import jax.numpy as jnp
from jax import lax
from jax.experimental import pallas as pl
from jax.experimental.pallas import tpu as pltpu

LANES = 128
SUBLANES = 8
TILE_ELEMS = SUBLANES * LANES          # 1024 elements per native (8, 128) tile
MAX_TILES_PER_BLOCK = 512              # (512, 8, 128) f32 = 2 MiB per input tile
N_CORE_SPLITS = 2                      # leading "parallel" axis (v7x megacore)


def _focal_loss_kernel(pred_ref, true_ref, out_ref, *,
                       gamma, alpha, n_valid, tiles_per_block, steps_per_core,
                       full_blocks):
    c = pl.program_id(0)               # core-split index ("parallel")
    i = pl.program_id(1)               # reduction step   ("arbitrary")

    # Output block is resident across the whole i axis -> use it as the
    # accumulator directly (no VMEM scratch needed).
    @pl.when(i == 0)
    def _():
        out_ref[...] = jnp.zeros_like(out_ref)

    x = pred_ref[...].astype(jnp.float32)
    t = true_ref[...].astype(jnp.float32)

    # BCEWithLogitsLoss (reduction='none'), numerically stable form.
    # e = exp(-|x|) is reused for both the log term and the sigmoid.
    e = jnp.exp(-jnp.abs(x))
    bce = jnp.maximum(x, 0.0) - x * t + jnp.log1p(e)

    p = jnp.where(x >= 0.0, 1.0, e) / (1.0 + e)        # sigmoid(x)
    p_t = t * p + (1.0 - t) * (1.0 - p)
    u = 1.0 - p_t
    alpha_factor = t * alpha + (1.0 - t) * (1.0 - alpha)
    if gamma == 1.5:
        mod = u * jnp.sqrt(u)          # avoid generic pow (log+exp on EUP)
    elif gamma == 2.0:
        mod = u * u
    elif gamma == 1.0:
        mod = u
    elif gamma == 0.0:
        mod = jnp.ones_like(u)
    else:
        mod = u ** gamma
    loss = bce * alpha_factor * mod

    # Only blocks overlapping the padded / out-of-range tail need masking.
    gb = c * steps_per_core + i                        # logical block index
    needs_mask = gb >= full_blocks

    @pl.when(needs_mask)
    def _():
        block_elems = tiles_per_block * TILE_ELEMS
        rem = n_valid - gb * block_elems               # valid elems this block
        tile = lax.broadcasted_iota(jnp.int32, loss.shape, 0)
        sub = lax.broadcasted_iota(jnp.int32, loss.shape, 1)
        lane = lax.broadcasted_iota(jnp.int32, loss.shape, 2)
        local = (tile * SUBLANES + sub) * LANES + lane
        masked = jnp.where(local < rem, loss, 0.0)
        out_ref[...] += jnp.sum(masked, axis=0, keepdims=True)

    @pl.when(jnp.logical_not(needs_mask))
    def _():
        out_ref[...] += jnp.sum(loss, axis=0, keepdims=True)


def focal_loss(pred, true, gamma=1.5, alpha=0.25, reduction="mean",
               max_tiles_per_block=MAX_TILES_PER_BLOCK):
    """FocalLoss(nn.BCEWithLogitsLoss(), gamma, alpha)(pred, true)."""
    assert pred.shape == true.shape
    n = int(pred.size)

    flat_pred = pred.reshape(-1)
    flat_true = true.reshape(-1)

    # Pad only for ragged element counts, and only up to one native tile; the
    # kernel masks the tail so padded values never contribute.
    n_pad = pl.cdiv(n, TILE_ELEMS) * TILE_ELEMS
    if n_pad != n:
        flat_pred = jnp.pad(flat_pred, (0, n_pad - n))
        flat_true = jnp.pad(flat_true, (0, n_pad - n))

    n_tiles = n_pad // TILE_ELEMS
    pred3 = flat_pred.reshape(n_tiles, SUBLANES, LANES)
    true3 = flat_true.reshape(n_tiles, SUBLANES, LANES)

    tiles_per_block = min(max_tiles_per_block, n_tiles)
    block_elems = tiles_per_block * TILE_ELEMS
    total_blocks = pl.cdiv(n_tiles, tiles_per_block)
    steps_per_core = pl.cdiv(total_blocks, N_CORE_SPLITS)
    grid = (N_CORE_SPLITS, steps_per_core)
    full_blocks = n // block_elems      # blocks that need no tail masking

    def in_map(c, i):
        # Clamp so over-allocated steps (core split / ceil division) re-read a
        # valid block; their elements are masked out in-kernel.
        return (jnp.minimum(c * steps_per_core + i, total_blocks - 1), 0, 0)

    in_spec = pl.BlockSpec((tiles_per_block, SUBLANES, LANES), in_map)
    out_spec = pl.BlockSpec((1, SUBLANES, LANES), lambda c, i: (c, 0, 0))

    kernel = functools.partial(
        _focal_loss_kernel,
        gamma=float(gamma), alpha=float(alpha), n_valid=n,
        tiles_per_block=tiles_per_block, steps_per_core=steps_per_core,
        full_blocks=full_blocks)

    partials = pl.pallas_call(
        kernel,
        out_shape=jax.ShapeDtypeStruct((N_CORE_SPLITS, SUBLANES, LANES),
                                       jnp.float32),
        grid_spec=pltpu.PrefetchScalarGridSpec(
            num_scalar_prefetch=0,
            grid=grid,
            in_specs=[in_spec, in_spec],
            out_specs=out_spec,
        ),
        compiler_params=pltpu.CompilerParams(
            dimension_semantics=("parallel", "arbitrary")),
    )(pred3, true3)

    total = jnp.sum(partials)
    if reduction == "mean":
        return total / jnp.float32(n)
    elif reduction == "sum":
        return total
    else:
        # TODO(synk): reduction='none' needs an elementwise output path; this
        # fused-reduction kernel only produces the reduced scalar.
        raise NotImplementedError("reduction='none' not implemented in kernel")


def _focal_loss_ref(pred, true, gamma=1.5, alpha=0.25):
    x = pred.astype(jnp.float32)
    t = true.astype(jnp.float32)
    bce = jnp.maximum(x, 0.0) - x * t + jnp.log1p(jnp.exp(-jnp.abs(x)))
    p = jax.nn.sigmoid(x)
    p_t = t * p + (1.0 - t) * (1.0 - p)
    af = t * alpha + (1.0 - t) * (1.0 - alpha)
    mf = (1.0 - p_t) ** gamma
    return jnp.mean(bce * af * mf)


if __name__ == "__main__":
    key = jax.random.PRNGKey(0)
    k1, k2, k3, k4, k5, k6 = jax.random.split(key, 6)

    # Small NCHW-shaped logits / targets, as a detector head would emit.
    B, C, H, W = 2, 4, 16, 16
    pred = jax.random.normal(k1, (B, C, H, W), dtype=jnp.float32) * 2.0
    true = (jax.random.uniform(k2, (B, C, H, W)) > 0.7).astype(jnp.float32)

    out = jax.block_until_ready(focal_loss(pred, true, gamma=1.5, alpha=0.25))
    ref = jax.block_until_ready(_focal_loss_ref(pred, true, 1.5, 0.25))
    assert jnp.allclose(out, ref, rtol=1e-4, atol=1e-6), (out, ref)

    # Ragged element count exercises the in-kernel tail mask.
    pred_r = jax.random.normal(k3, (3, 5, 7, 9), dtype=jnp.float32)
    true_r = (jax.random.uniform(k4, (3, 5, 7, 9)) > 0.5).astype(jnp.float32)
    out_r = jax.block_until_ready(focal_loss(pred_r, true_r))
    ref_r = jax.block_until_ready(_focal_loss_ref(pred_r, true_r))
    assert jnp.allclose(out_r, ref_r, rtol=1e-4, atol=1e-6), (out_r, ref_r)

    # Force multiple grid steps (small block override) to exercise the
    # accumulation loop and the core-split / over-allocated-step masking.
    pred_m = jax.random.normal(k5, (2, 4, 32, 40), dtype=jnp.float32)
    true_m = (jax.random.uniform(k6, (2, 4, 32, 40)) > 0.6).astype(jnp.float32)
    out_m = jax.block_until_ready(focal_loss(pred_m, true_m,
                                             max_tiles_per_block=2))
    ref_m = jax.block_until_ready(_focal_loss_ref(pred_m, true_m))
    assert jnp.allclose(out_m, ref_m, rtol=1e-4, atol=1e-6), (out_m, ref_m)

    print("KERNEL_OK")
</pallas_src>

<mosaic_0001>
module attributes {stable_mosaic.version = 11 : i64} {
  func.func @_focal_loss_kernel(%arg0: i32, %arg1: i32, %arg2: memref<2x8x128xf32, #tpu.memory_space<vmem>>, %arg3: memref<2x8x128xf32, #tpu.memory_space<vmem>>, %arg4: memref<1x8x128xf32, #tpu.memory_space<vmem>>) attributes {dimension_semantics = [#tpu.dimension_semantics<parallel>, #tpu.dimension_semantics<arbitrary>], iteration_bounds = array<i64: 2, 1>, scalar_prefetch = 0 : i64, scratch_operands = 0 : i64, tpu.core_type = #tpu.core_type<tc>, window_params = [{transform_indices = @transform_0, window_bounds = array<i64: 2, 8, 128>}, {transform_indices = @transform_1, window_bounds = array<i64: 2, 8, 128>}, {transform_indices = @transform_2, window_bounds = array<i64: 1, 8, 128>}]} {
    %c0_i32 = arith.constant 0 : i32
    %0 = arith.cmpi eq, %arg1, %c0_i32 : i32
    %1 = arith.extui %0 : i1 to i32
    %c0_i32_0 = arith.constant 0 : i32
    %2 = arith.cmpi ne, %1, %c0_i32_0 : i32
    scf.if %2 {
      %cst_19 = arith.constant 0.000000e+00 : f32
      %50 = vector.broadcast %cst_19 : f32 to vector<1x8x128xf32>
      %c0_20 = arith.constant 0 : index
      %c0_21 = arith.constant 0 : index
      %c0_22 = arith.constant 0 : index
      %51 = vector.load %arg4[%c0_20, %c0_21, %c0_22] : memref<1x8x128xf32, #tpu.memory_space<vmem>>, vector<1x8x128xf32>
      tpu.vector_store %arg4[%c0_20, %c0_21, %c0_22], %50 {strides = array<i32>} : memref<1x8x128xf32, #tpu.memory_space<vmem>>, vector<1x8x128xf32>,
    } else {
    }
    %c0 = arith.constant 0 : index
    %c0_1 = arith.constant 0 : index
    %c0_2 = arith.constant 0 : index
    %3 = vector.load %arg2[%c0, %c0_1, %c0_2] : memref<2x8x128xf32, #tpu.memory_space<vmem>>, vector<2x8x128xf32>
    %c0_3 = arith.constant 0 : index
    %c0_4 = arith.constant 0 : index
    %c0_5 = arith.constant 0 : index
    %4 = vector.load %arg3[%c0_3, %c0_4, %c0_5] : memref<2x8x128xf32, #tpu.memory_space<vmem>>, vector<2x8x128xf32>
    %5 = math.absf %3 : vector<2x8x128xf32>
    %cst = arith.constant 0.000000e+00 : f32
    %6 = vector.broadcast %cst : f32 to vector<2x8x128xf32>
    %7 = arith.subf %6, %5 : vector<2x8x128xf32>
    %8 = math.exp %7 : vector<2x8x128xf32>
    %cst_6 = arith.constant 0.000000e+00 : f32
    %9 = vector.broadcast %cst_6 : f32 to vector<2x8x128xf32>
    %10 = arith.maximumf %3, %9 : vector<2x8x128xf32>
    %11 = arith.mulf %3, %4 : vector<2x8x128xf32>
    %12 = arith.subf %10, %11 : vector<2x8x128xf32>
    %13 = math.log1p %8 : vector<2x8x128xf32>
    %14 = arith.addf %12, %13 : vector<2x8x128xf32>
    %cst_7 = arith.constant 0.000000e+00 : f32
    %15 = vector.broadcast %cst_7 : f32 to vector<2x8x128xf32>
    %16 = arith.cmpf oge, %3, %15 : vector<2x8x128xf32>
    %cst_8 = arith.constant 1.000000e+00 : f32
    %17 = vector.broadcast %cst_8 : f32 to vector<2x8x128xf32>
    %18 = arith.select %16, %17, %8 : vector<2x8x128xi1>, vector<2x8x128xf32>
    %cst_9 = arith.constant 1.000000e+00 : f32
    %19 = vector.broadcast %cst_9 : f32 to vector<2x8x128xf32>
    %20 = arith.addf %19, %8 : vector<2x8x128xf32>
    %21 = arith.divf %18, %20 : vector<2x8x128xf32>
    %22 = arith.mulf %4, %21 : vector<2x8x128xf32>
    %cst_10 = arith.constant 1.000000e+00 : f32
    %23 = vector.broadcast %cst_10 : f32 to vector<2x8x128xf32>
    %24 = arith.subf %23, %4 : vector<2x8x128xf32>
    %cst_11 = arith.constant 1.000000e+00 : f32
    %25 = vector.broadcast %cst_11 : f32 to vector<2x8x128xf32>
    %26 = arith.subf %25, %21 : vector<2x8x128xf32>
    %27 = arith.mulf %24, %26 : vector<2x8x128xf32>
    %28 = arith.addf %22, %27 : vector<2x8x128xf32>
    %cst_12 = arith.constant 1.000000e+00 : f32
    %29 = vector.broadcast %cst_12 : f32 to vector<2x8x128xf32>
    %30 = arith.subf %29, %28 : vector<2x8x128xf32>
    %cst_13 = arith.constant 2.500000e-01 : f32
    %31 = vector.broadcast %cst_13 : f32 to vector<2x8x128xf32>
    %32 = arith.mulf %4, %31 : vector<2x8x128xf32>
    %cst_14 = arith.constant 1.000000e+00 : f32
    %33 = vector.broadcast %cst_14 : f32 to vector<2x8x128xf32>
    %34 = arith.subf %33, %4 : vector<2x8x128xf32>
    %cst_15 = arith.constant 7.500000e-01 : f32
    %35 = vector.broadcast %cst_15 : f32 to vector<2x8x128xf32>
    %36 = arith.mulf %34, %35 : vector<2x8x128xf32>
    %37 = arith.addf %32, %36 : vector<2x8x128xf32>
    %38 = math.sqrt %30 : vector<2x8x128xf32>
    %39 = arith.mulf %30, %38 : vector<2x8x128xf32>
    %40 = arith.mulf %14, %37 : vector<2x8x128xf32>
    %41 = arith.mulf %40, %39 : vector<2x8x128xf32>
    %c1_i32 = arith.constant 1 : i32
    %42 = arith.muli %arg0, %c1_i32 : i32
    %43 = arith.addi %42, %arg1 : i32
    %c1_i32_16 = arith.constant 1 : i32
    %44 = arith.cmpi sge, %43, %c1_i32_16 : i32
    %45 = arith.extui %44 : i1 to i32
    %c0_i32_17 = arith.constant 0 : i32
    %46 = arith.cmpi ne, %45, %c0_i32_17 : i32
    scf.if %46 {
      %c2048_i32 = arith.constant 2048 : i32
      %50 = arith.muli %43, %c2048_i32 : i32
      %c2048_i32_19 = arith.constant 2048 : i32
      %51 = arith.subi %c2048_i32_19, %50 : i32
      %52 = tpu.iota {dimensions = array<i32: 0>} : vector<2x8x128xi32>
      %53 = tpu.iota {dimensions = array<i32: 1>} : vector<2x8x128xi32>
      %54 = tpu.iota {dimensions = array<i32: 2>} : vector<2x8x128xi32>
      %c8_i32 = arith.constant 8 : i32
      %55 = vector.broadcast %c8_i32 : i32 to vector<2x8x128xi32>
      %56 = arith.muli %52, %55 : vector<2x8x128xi32>
      %57 = arith.addi %56, %53 : vector<2x8x128xi32>
      %c128_i32 = arith.constant 128 : i32
      %58 = vector.broadcast %c128_i32 : i32 to vector<2x8x128xi32>
      %59 = arith.muli %57, %58 : vector<2x8x128xi32>
      %60 = arith.addi %59, %54 : vector<2x8x128xi32>
      %61 = vector.broadcast %51 : i32 to vector<2x8x128xi32>
      %62 = arith.cmpi slt, %60, %61 : vector<2x8x128xi32>
      %cst_20 = arith.constant 0.000000e+00 : f32
      %63 = vector.broadcast %cst_20 : f32 to vector<2x8x128xf32>
      %64 = arith.select %62, %41, %63 : vector<2x8x128xi1>, vector<2x8x128xf32>
      %c0_21 = arith.constant 0 : index
      %c0_22 = arith.constant 0 : index
      %c0_23 = arith.constant 0 : index
      %65 = vector.load %arg4[%c0_21, %c0_22, %c0_23] : memref<1x8x128xf32, #tpu.memory_space<vmem>>, vector<1x8x128xf32>
      %cst_24 = arith.constant dense<0.000000e+00> : vector<8x128xf32>
      %66 = vector.multi_reduction <add>, %64, %cst_24 [0] : vector<2x8x128xf32> to vector<8x128xf32>
      %67 = vector.shape_cast %66 : vector<8x128xf32> to vector<1x8x128xf32>
      %68 = arith.addf %65, %67 : vector<1x8x128xf32>
      %c0_25 = arith.constant 0 : index
      %c0_26 = arith.constant 0 : index
      %c0_27 = arith.constant 0 : index
      %69 = vector.load %arg4[%c0_25, %c0_26, %c0_27] : memref<1x8x128xf32, #tpu.memory_space<vmem>>, vector<1x8x128xf32>
      tpu.vector_store %arg4[%c0_25, %c0_26, %c0_27], %68 {strides = array<i32>} : memref<1x8x128xf32, #tpu.memory_space<vmem>>, vector<1x8x128xf32>,
    } else {
    }
    %true = arith.constant true
    %47 = arith.xori %44, %true : i1
    %48 = arith.extui %47 : i1 to i32
    %c0_i32_18 = arith.constant 0 : i32
    %49 = arith.cmpi ne, %48, %c0_i32_18 : i32
    scf.if %49 {
      %c0_19 = arith.constant 0 : index
      %c0_20 = arith.constant 0 : index
      %c0_21 = arith.constant 0 : index
      %50 = vector.load %arg4[%c0_19, %c0_20, %c0_21] : memref<1x8x128xf32, #tpu.memory_space<vmem>>, vector<1x8x128xf32>
      %cst_22 = arith.constant dense<0.000000e+00> : vector<8x128xf32>
      %51 = vector.multi_reduction <add>, %41, %cst_22 [0] : vector<2x8x128xf32> to vector<8x128xf32>
      %52 = vector.shape_cast %51 : vector<8x128xf32> to vector<1x8x128xf32>
      %53 = arith.addf %50, %52 : vector<1x8x128xf32>
      %c0_23 = arith.constant 0 : index
      %c0_24 = arith.constant 0 : index
      %c0_25 = arith.constant 0 : index
      %54 = vector.load %arg4[%c0_23, %c0_24, %c0_25] : memref<1x8x128xf32, #tpu.memory_space<vmem>>, vector<1x8x128xf32>
      tpu.vector_store %arg4[%c0_23, %c0_24, %c0_25], %53 {strides = array<i32>} : memref<1x8x128xf32, #tpu.memory_space<vmem>>, vector<1x8x128xf32>,
    } else {
    }
    return
  }
  func.func @transform_0(%arg0: i32, %arg1: i32) -> (i32, i32, i32) {
    %c1_i32 = arith.constant 1 : i32
    %0 = arith.muli %arg0, %c1_i32 : i32
    %1 = arith.addi %0, %arg1 : i32
    %c0_i32 = arith.constant 0 : i32
    %2 = arith.minsi %1, %c0_i32 : i32
    %c0_i32_0 = arith.constant 0 : i32
    %c0_i32_1 = arith.constant 0 : i32
    %c0_i32_2 = arith.constant 0 : i32
    return %2, %c0_i32_0, %c0_i32_1 : i32, i32, i32
  }
  func.func @transform_1(%arg0: i32, %arg1: i32) -> (i32, i32, i32) {
    %c1_i32 = arith.constant 1 : i32
    %0 = arith.muli %arg0, %c1_i32 : i32
    %1 = arith.addi %0, %arg1 : i32
    %c0_i32 = arith.constant 0 : i32
    %2 = arith.minsi %1, %c0_i32 : i32
    %c0_i32_0 = arith.constant 0 : i32
    %c0_i32_1 = arith.constant 0 : i32
    %c0_i32_2 = arith.constant 0 : i32
    return %2, %c0_i32_0, %c0_i32_1 : i32, i32, i32
  }
  func.func @transform_2(%arg0: i32, %arg1: i32) -> (i32, i32, i32) {
    %c0_i32 = arith.constant 0 : i32
    %c0_i32_0 = arith.constant 0 : i32
    %c0_i32_1 = arith.constant 0 : i32
    return %arg0, %c0_i32, %c0_i32_0 : i32, i32, i32
  }
}

</mosaic_0001>

<llo_original>
// kernel: tpu_custom_call.1
$region0: #{tpu_custom_call.1}
  #allocation0 [shape = 'u32[]', space=smem, size = 0x4, offset = 0x4, fixed_abs, tag = 'smem constant byte address 0x4 - core index']
  #allocation1 [shape = 'u32[144,128]{1,0:T(1,128)}', space=vmem, size = 0x12000, scoped, tag = 'internal scratch']
  %s0 = inlined_call_operand.hbm [shape: f32[2,8,128], index: 0, kind: input, shape index: {}]
  %s1 = inlined_call_operand.hbm [shape: f32[2,8,128], index: 1, kind: input, shape index: {}]
  %s2 = inlined_call_operand.hbm [shape: f32[2,8,128], index: 2, kind: output, shape index: {}]
  %s3 = sld [smem:[#allocation0]]
  $region61: #{tpu_custom_call.1} parent=0
    _
  %s5 = ssub.s32 1, %s3
  %s6 = scalar_select 0, %s5, %s3
  $region1: #{tpu_custom_call.1} parent=0
    #allocation2 [shape = 'u8[16384]{0}', space=vmem, size = 0x4000, scoped, tag = 'input window, operand 0']
    #allocation3 [shape = 's32[2]{0}', space=sflag, size = 0x8, scoped, tag = 'scoped memory for tpu_custom_call.1']
    #allocation4 [shape = 's32[2]{0}', space=sflag, size = 0x8, scoped, tag = 'scoped memory for tpu_custom_call.1']
    #allocation5 [shape = 'u8[16384]{0}', space=vmem, size = 0x4000, scoped, tag = 'input window, operand 1']
    #allocation6 [shape = 's32[2]{0}', space=sflag, size = 0x8, scoped, tag = 'scoped memory for tpu_custom_call.1']
    #allocation7 [shape = 'u8[8192]{0}', space=vmem, size = 0x2000, scoped, tag = 'output window, operand 0']
    %7 = vsyncpa [#allocation3], 0
    %s8 = scalar_lea.sflag [#allocation3], 1
    %9 = vsyncpa %s8, 0
    %10 = vsyncpa [#allocation6], 0
    %s11 = scalar_lea.sflag [#allocation6], 1
    %12 = vsyncpa %s11, 0
    %13 = vsyncpa [#allocation4], 0
    %s14 = scalar_lea.sflag [#allocation4], 1
    %15 = vsyncpa %s14, 0
    loop: start=0, step=1, limit=4
    $region2: #{tpu_custom_call.1} parent=1 // loop_pre_header
      _
    $region3: #{tpu_custom_call.1} parent=1 // loop_header
      %s17 = sphi 0, %s21
      %p18 = scmp.ge.s32.totalorder %s17, 4
      %s24 = sphi 0, %s36
      %s25 = sphi 0, %s32
      %s26 = sphi 0, %s24
      %s27 = sphi 0, %s25
      %s28 = sphi 0, %s26
      %s29 = sphi 0, %s27
      %s45 = sphi 0, %s47
      %s48 = sphi 0, %s45
      %s49 = sphi 0, %s48
      %s65 = sphi 0, %s49
      %s77 = sphi 0, %s79
      %s80 = sphi 0, %s77
      %s81 = sphi 0, %s80
      %s97 = sphi 0, %s81
      %s103 = sphi 0, %s105
      %s106 = sphi 0, %s103
      %s107 = sphi 0, %s106
      %s123 = sphi 0, %s107
    $region4: #{tpu_custom_call.1} parent=1 // loop_header_branch
      %20 = sbr.rel (%p18) target = $region8
    $region5: #{tpu_custom_call.1} parent=1 // loop_body
      %s22 = ssub.s32 %s17, 1
      %s23 = ssub.s32 %s17, 2
      %s30 = sadd.s32 1, %s25
      %p31 = scmp.ge.s32.totalorder %s30, 1
      %s32 = scalar_select %p31, 0, %s30
      %s33 = sadd.s32 1, %s24
      %s34 = scalar_select %p31, %s33, %s24
      %p35 = scmp.ge.s32.totalorder %s34, 2
      %s36 = scalar_select %p35, 0, %s34
      %s37 = sadd.s32 %s24, %s25
      %p38 = scmp.lt.s32.totalorder %s37, 0
      %s39 = scalar_select %p38, %s37, 0
      %s40 = sadd.s32 %s36, %s32
      %p41 = scmp.lt.s32.totalorder %s40, 0
      %s42 = scalar_select %p41, %s40, 0
      %s43 = ssub.s32 %s39, %s42
      %p44 = scmp.eq.s32.totalorder %s43, 0
      %s46 = sadd.s32 %s45, 1
      %s47 = scalar_select %p44, %s45, %s46
      %p50 = pneg %p44
      %p51 = scmp.eq.s32.totalorder %s17, 1
      %p52 = por %p50, %p51
      %p53 = scmp.ne.s32.totalorder %s45, %s48
      %p54 = scmp.eq.s32.totalorder %s17, 0
      %p55 = por %p53, %p54
      %p56 = scmp.ne.s32.totalorder %s45, %s48
      %p57 = scmp.eq.s32.totalorder %s22, 1
      %p58 = por %p56, %p57
      %p59 = scmp.ne.s32.totalorder %s48, %s49
      %p60 = scmp.eq.s32.totalorder %s22, 0
      %p61 = por %p59, %p60
      %p62 = scmp.ne.s32.totalorder %s48, %s49
      %p63 = scmp.eq.s32.totalorder %s23, 1
      %p64 = por %p62, %p63
      %p66 = scmp.ne.s32.totalorder %s49, %s65
      %p67 = scmp.eq.s32.totalorder %s23, 0
      %p68 = por %p66, %p67
      %s69 = sadd.s32 %s24, %s25
      %p70 = scmp.lt.s32.totalorder %s69, 0
      %s71 = scalar_select %p70, %s69, 0
      %s72 = sadd.s32 %s36, %s32
      %p73 = scmp.lt.s32.totalorder %s72, 0
      %s74 = scalar_select %p73, %s72, 0
      %s75 = ssub.s32 %s71, %s74
      %p76 = scmp.eq.s32.totalorder %s75, 0
      %s78 = sadd.s32 %s77, 1
      %s79 = scalar_select %p76, %s77, %s78
      %p82 = pneg %p76
      %p83 = scmp.eq.s32.totalorder %s17, 1
      %p84 = por %p82, %p83
      %p85 = scmp.ne.s32.totalorder %s77, %s80
      %p86 = scmp.eq.s32.totalorder %s17, 0
      %p87 = por %p85, %p86
      %p88 = scmp.ne.s32.totalorder %s77, %s80
      %p89 = scmp.eq.s32.totalorder %s22, 1
      %p90 = por %p88, %p89
      %p91 = scmp.ne.s32.totalorder %s80, %s81
      %p92 = scmp.eq.s32.totalorder %s22, 0
      %p93 = por %p91, %p92
      %p94 = scmp.ne.s32.totalorder %s80, %s81
      %p95 = scmp.eq.s32.totalorder %s23, 1
      %p96 = por %p94, %p95
      %p98 = scmp.ne.s32.totalorder %s81, %s97
      %p99 = scmp.eq.s32.totalorder %s23, 0
      %p100 = por %p98, %p99
      %s101 = ssub.s32 %s24, %s36
      %p102 = scmp.eq.s32.totalorder %s101, 0
      %s104 = sadd.s32 %s103, 1
      %s105 = scalar_select %p102, %s103, %s104
      %p108 = pneg %p102
      %p109 = scmp.eq.s32.totalorder %s17, 1
      %p110 = por %p108, %p109
      %p111 = scmp.ne.s32.totalorder %s103, %s106
      %p112 = scmp.eq.s32.totalorder %s17, 0
      %p113 = por %p111, %p112
      %p114 = scmp.ne.s32.totalorder %s103, %s106
      %p115 = scmp.eq.s32.totalorder %s22, 1
      %p116 = por %p114, %p115
      %p117 = scmp.ne.s32.totalorder %s106, %s107
      %p118 = scmp.eq.s32.totalorder %s22, 0
      %p119 = por %p117, %p118
      %p120 = scmp.ne.s32.totalorder %s106, %s107
      %p121 = scmp.eq.s32.totalorder %s23, 1
      %p122 = por %p120, %p121
      %p124 = scmp.ne.s32.totalorder %s107, %s123
      %p125 = scmp.eq.s32.totalorder %s23, 0
      %p126 = por %p124, %p125
      %p127 = scmp.le.s32.totalorder 1, %s17
      %p128 = scmp.lt.s32.totalorder %s17, 3
      %p129 = pnand %p127, %p128
      %p130 = pneg %p129
      // Predicated region
      $region9: #{tpu_custom_call.1} parent=5 // pred_check
        _
      $region10: #{tpu_custom_call.1} parent=5 // pred_check_branch
        %132 = sbr.rel (%p129) target = $region12
      $region11: #{tpu_custom_call.1} parent=5 // pred_region
        %s133 = ssub.s32 %s17, 1
      $region12: #{tpu_custom_call.1} parent=5 // pred_fallthru
        _
      %p134 = scmp.lt.s32.totalorder %s17, 2
      // Predicated region
      $region13: #{tpu_custom_call.1} parent=5 // pred_check
        %p135 = pneg %p134
      $region14: #{tpu_custom_call.1} parent=5 // pred_check_branch
        %137 = sbr.rel (%p135) target = $region16
      $region15: #{tpu_custom_call.1} parent=5 // pred_region
        // Predicated region
        $region17: #{tpu_custom_call.1} parent=15 // pred_check
          %p138 = pneg %p55
        $region18: #{tpu_custom_call.1} parent=15 // pred_check_branch
          %140 = sbr.rel (%p138) target = $region20
        $region19: #{tpu_custom_call.1} parent=15 // pred_region
          %s141 = sand.u32 %s45, 1
          %s142 = scalar_lea.sflag [#allocation3], %s141
          %s143 = sand.u32 %s45, 1
          %s144 = smul.addr %s143, 16
          %s145 = scalar_lea.vmem [#allocation2], %s144
          %s146 = sadd.s32 %s24, %s25
          %p147 = scmp.lt.s32.totalorder %s146, 0
          %s148 = scalar_select %p147, %s146, 0
          %s149 = smul.u32 2, %s148
          %s151 = ssub.s32 256, 256
          %152 = vsyncadd %s142, %s151
          %s153 = smul.addr %s149, 128
          %s154 = scalar_lea.hbm %s0, %s153
          %s155 = sshll.u32 %s145, 4
          %s156 = int_to_ptr.vmem [resolvable:$true] %s155
          %161 = dma.hbm_to_vmem [thread:$0]  %s154, 256, %s156, %s142, 128, 128, 8
        $region20: #{tpu_custom_call.1} parent=15 // pred_fallthru
          _
        // Predicated region
        $region21: #{tpu_custom_call.1} parent=15 // pred_check
          %p162 = pneg %p87
        $region22: #{tpu_custom_call.1} parent=15 // pred_check_branch
          %164 = sbr.rel (%p162) target = $region24
        $region23: #{tpu_custom_call.1} parent=15 // pred_region
          %s165 = sand.u32 %s77, 1
          %s166 = scalar_lea.sflag [#allocation6], %s165
          %s167 = sand.u32 %s77, 1
          %s168 = smul.addr %s167, 16
          %s169 = scalar_lea.vmem [#allocation5], %s168
          %s170 = sadd.s32 %s24, %s25
          %p171 = scmp.lt.s32.totalorder %s170, 0
          %s172 = scalar_select %p171, %s170, 0
          %s173 = smul.u32 2, %s172
          %s175 = ssub.s32 256, 256
          %176 = vsyncadd %s166, %s175
          %s177 = smul.addr %s173, 128
          %s178 = scalar_lea.hbm %s1, %s177
          %s179 = sshll.u32 %s169, 4
          %s180 = int_to_ptr.vmem [resolvable:$true] %s179
          %185 = dma.hbm_to_vmem [thread:$0]  %s178, 256, %s180, %s166, 128, 128, 8
        $region24: #{tpu_custom_call.1} parent=15 // pred_fallthru
          _
      $region16: #{tpu_custom_call.1} parent=5 // pred_fallthru
        _
      %p186 = scmp.le.s32.totalorder 1, %s17
      %p187 = scmp.lt.s32.totalorder %s17, 3
      %p188 = pnand %p186, %p187
      %p189 = pneg %p188
      // Predicated region
      $region25: #{tpu_custom_call.1} parent=5 // pred_check
        _
      $region26: #{tpu_custom_call.1} parent=5 // pred_check_branch
        %191 = sbr.rel (%p188) target = $region28
      $region27: #{tpu_custom_call.1} parent=5 // pred_region
        %s192 = ssub.s32 %s17, 1
        %s193 = sand.u32 %s48, 1
        %s194 = scalar_lea.sflag [#allocation3], %s193
        %s195 = sand.u32 %s48, 1
        %s196 = smul.addr %s195, 16
        %s197 = scalar_lea.vmem [#allocation2], %s196
        // Predicated region
        $region29: #{tpu_custom_call.1} parent=27 // pred_check
          %p198 = pneg %p61
        $region30: #{tpu_custom_call.1} parent=27 // pred_check_branch
          %200 = sbr.rel (%p198) target = $region32
        $region31: #{tpu_custom_call.1} parent=27 // pred_region
          %201 = dma.done %s194, 256
        $region32: #{tpu_custom_call.1} parent=27 // pred_fallthru
          _
        %s202 = sand.u32 %s80, 1
        %s203 = scalar_lea.sflag [#allocation6], %s202
        %s204 = sand.u32 %s80, 1
        %s205 = smul.addr %s204, 16
        %s206 = scalar_lea.vmem [#allocation5], %s205
        // Predicated region
        $region33: #{tpu_custom_call.1} parent=27 // pred_check
          %p207 = pneg %p93
        $region34: #{tpu_custom_call.1} parent=27 // pred_check_branch
          %209 = sbr.rel (%p207) target = $region36
        $region35: #{tpu_custom_call.1} parent=27 // pred_region
          %210 = dma.done %s203, 256
        $region36: #{tpu_custom_call.1} parent=27 // pred_fallthru
          _
        %s211 = sand.u32 %s48, 1
        %s212 = scalar_lea.sflag [#allocation3], %s211
        %s213 = sand.u32 %s48, 1
        %s214 = smul.addr %s213, 16
        %s215 = scalar_lea.vmem [#allocation2], %s214
        %p216 = pneg %p61
        %p217 = pneg %p58
        %s218 = sand.u32 %s80, 1
        %s219 = scalar_lea.sflag [#allocation6], %s218
        %s220 = sand.u32 %s80, 1
        %s221 = smul.addr %s220, 16
        %s222 = scalar_lea.vmem [#allocation5], %s221
        %p223 = pneg %p93
        %p224 = pneg %p90
        %p225 = pneg %p119
        %p226 = pneg %p116
        %s227 = sand.u32 %s106, 1
        %s228 = scalar_lea.sflag [#allocation4], %s227
        %s229 = sand.u32 %s106, 1
        %s230 = smul.addr %s229, 8
        %s231 = scalar_lea.vmem [#allocation7], %s230
        %s232 = sadd.s32 %s26, %s27
        %p233 = scmp.lt.s32.totalorder %s232, 0
        %s234 = scalar_select %p233, %s232, 0
        %s235 = smul.u32 2, %s234
        %s236 = sadd.s32 %s26, %s27
        %p237 = scmp.lt.s32.totalorder %s236, 0
        %s238 = scalar_select %p237, %s236, 0
        %s239 = smul.u32 2, %s238
        %p240 = scmp.eq.s32.totalorder %s27, 0
        // Predicated region
        $region37: #{tpu_custom_call.1} parent=27 // pred_check
          %p241 = pneg %p240
        $region38: #{tpu_custom_call.1} parent=27 // pred_check_branch
          %243 = sbr.rel (%p241) target = $region40
        $region39: #{tpu_custom_call.1} parent=27 // pred_region
          %244 = vst [vmem:[%s231] sm:$0xff] 0.0
        $region40: #{tpu_custom_call.1} parent=27 // pred_fallthru
          _
        %v245 = vld [vmem:[%s197] sm:$0xff]
        %v246 = vld [vmem:[%s197 + $0x8] sm:$0xff]
        %v247 = vld [vmem:[%s206] sm:$0xff]
        %v248 = vld [vmem:[%s206 + $0x8] sm:$0xff]
        %v249 = vand.u32 2147483647, %v245
        %v250 = vand.u32 2147483647, %v246
        %v251 = vsub.f32 0.0, %v249
        %v252 = vsub.f32 0.0, %v250
        %v253 = vmul.f32 %v251, 1.442695
        %v254 = vpow.pop %v253
        %v255 = vmul.f32 %v252, 1.442695
        %v256 = vpow.pop %v255
        %v257 = vmax.f32 %v245, 0.0
        %v258 = vmax.f32 %v246, 0.0
        %v259 = vmul.f32 %v245, %v247
        %v260 = vmul.f32 %v246, %v248
        %v261 = vsub.f32 %v257, %v259
        %v262 = vsub.f32 %v258, %v260
        %v263 = vadd.f32 %v254, 1.0
        %v264 = vlog2.pop %v263
        %v265 = vmul.f32 %v264, 0.6931472
        %v266 = vmul.f32 -0.5, %v254
        %v267 = vadd.f32 %v266, 1.0
        %v268 = vmul.f32 %v267, %v254
        %v269 = vand.u32 2147483647, %v254
        %vm270 = vcmp.lt.f32.partialorder %v269, 0.0004427343
        %v271 = vsel %vm270, %v268, %v265
        %v272 = vadd.f32 %v256, 1.0
        %v273 = vlog2.pop %v272
        %v274 = vmul.f32 %v273, 0.6931472
        %v275 = vmul.f32 -0.5, %v256
        %v276 = vadd.f32 %v275, 1.0
        %v277 = vmul.f32 %v276, %v256
        %v278 = vand.u32 2147483647, %v256
        %vm279 = vcmp.lt.f32.partialorder %v278, 0.0004427343
        %v280 = vsel %vm279, %v277, %v274
        %v281 = vadd.f32 %v261, %v271
        %v282 = vadd.f32 %v262, %v280
        %vm283 = vcmp.ge.f32.partialorder %v245, 0.0
        %vm284 = vcmp.ge.f32.partialorder %v246, 0.0
        %v285 = vsel %vm283, 1.0, %v254
        %v286 = vsel %vm284, 1.0, %v256
        %v287 = vadd.f32 %v254, 1.0
        %v288 = vadd.f32 %v256, 1.0
        %v289 = vrcp.pop %v287
        %v290 = vmul.f32 %v285, %v289
        %v291 = vrcp.pop %v288
        %v292 = vmul.f32 %v286, %v291
        %v293 = vmul.f32 %v247, %v290
        %v294 = vmul.f32 %v248, %v292
        %v295 = vsub.f32 1.0, %v247
        %v296 = vsub.f32 1.0, %v248
        %v297 = vsub.f32 1.0, %v290
        %v298 = vsub.f32 1.0, %v292
        %v299 = vmul.f32 %v295, %v297
        %v300 = vmul.f32 %v296, %v298
        %v301 = vadd.f32 %v293, %v299
        %v302 = vadd.f32 %v294, %v300
        %v303 = vsub.f32 1.0, %v301
        %v304 = vsub.f32 1.0, %v302
        %v305 = vmul.f32 %v247, 0.25
        %v306 = vmul.f32 %v248, 0.25
        %v307 = vmul.f32 %v295, 0.75
        %v308 = vmul.f32 %v296, 0.75
        %v309 = vadd.f32 %v305, %v307
        %v310 = vadd.f32 %v306, %v308
        %v311 = vrsqrt.pop %v303
        %v312 = vmul.f32 %v303, %v311
        %vm313 = vcmp.eq.f32.partialorder %v303, inf
        %v314 = vsel %vm313, %v303, %v312
        %vm315 = vcmp.eq.f32.partialorder %v303, 0.0
        %v316 = vand.u32 %v303, 2147483648
        %v317 = vsel %vm315, %v316, %v314
        %v318 = vrsqrt.pop %v304
        %v319 = vmul.f32 %v304, %v318
        %vm320 = vcmp.eq.f32.partialorder %v304, inf
        %v321 = vsel %vm320, %v304, %v319
        %vm322 = vcmp.eq.f32.partialorder %v304, 0.0
        %v323 = vand.u32 %v304, 2147483648
        %v324 = vsel %vm322, %v323, %v321
        %v325 = vmul.f32 %v303, %v317
        %v326 = vmul.f32 %v304, %v324
        %v327 = vmul.f32 %v281, %v309
        %v328 = vmul.f32 %v282, %v310
        %v329 = vmul.f32 %v327, %v325
        %v330 = vmul.f32 %v328, %v326
        %s331 = sadd.s32 %s26, %s27
        %p332 = scmp.ge.s32.totalorder %s331, 1
        // Predicated region
        $region41: #{tpu_custom_call.1} parent=27 // pred_check
          %p333 = pneg %p332
        $region42: #{tpu_custom_call.1} parent=27 // pred_check_branch
          %335 = sbr.rel (%p333) target = $region44
        $region43: #{tpu_custom_call.1} parent=27 // pred_region
          %s336 = smul.u32 %s331, 2048
          %s337 = ssub.s32 2048, %s336
          %v338 = vlaneseq
          %v339 = vshrl.u32 %v338, 7
          %v340 = vlaneseq
          %v341 = vand.u32 %v340, 127
          %v342 = vadd.s32 %v339, 8
          %v343 = vmul.u32 %v339, 128
          %v344 = vmul.u32 %v342, 128
          %v345 = vadd.s32 %v343, %v341
          %v346 = vadd.s32 %v344, %v341
          %v347 = vstv %s337
          %vm348 = vcmp.lt.s32.totalorder %v345, %v347
          %vm349 = vcmp.lt.s32.totalorder %v346, %v347
          %v350 = vsel %vm348, %v329, 0.0
          %v351 = vsel %vm349, %v330, 0.0
          %v352 = vld [vmem:[%s231] sm:$0xff]
          %v353 = vadd.f32 %v350, %v351
          %v354 = vadd.f32 %v352, %v353
          %355 = vst [vmem:[%s231] sm:$0xff] %v354
        $region44: #{tpu_custom_call.1} parent=27 // pred_fallthru
          _
        %p356 = scmp.lt.s32.totalorder %s331, 1
        // Predicated region
        $region45: #{tpu_custom_call.1} parent=27 // pred_check
          %p357 = pneg %p356
        $region46: #{tpu_custom_call.1} parent=27 // pred_check_branch
          %359 = sbr.rel (%p357) target = $region48
        $region47: #{tpu_custom_call.1} parent=27 // pred_region
          %v360 = vld [vmem:[%s231] sm:$0xff]
          %v361 = vadd.f32 %v329, %v330
          %v362 = vadd.f32 %v360, %v361
          %363 = vst [vmem:[%s231] sm:$0xff] %v362
        $region48: #{tpu_custom_call.1} parent=27 // pred_fallthru
          _
        %s364 = sand.u32 %s106, 1
        %s365 = scalar_lea.sflag [#allocation4], %s364
        %s366 = sand.u32 %s106, 1
        %s367 = smul.addr %s366, 8
        %s368 = scalar_lea.vmem [#allocation7], %s367
        // Predicated region
        $region49: #{tpu_custom_call.1} parent=27 // pred_check
          %p369 = pneg %p116
        $region50: #{tpu_custom_call.1} parent=27 // pred_check_branch
          %371 = sbr.rel (%p369) target = $region52
        $region51: #{tpu_custom_call.1} parent=27 // pred_region
          %s373 = ssub.s32 128, 128
          %374 = vsyncadd %s365, %s373
          %s375 = smul.addr %s26, 128
          %s376 = scalar_lea.hbm %s2, %s375
          %s378 = sshll.u32 %s368, 4
          %s379 = int_to_ptr.vmem [resolvable:$true] %s378
          %381 = dma.vmem_to_hbm [thread:$0]  %s379, 128, %s376, %s365
        $region52: #{tpu_custom_call.1} parent=27 // pred_fallthru
          _
      $region28: #{tpu_custom_call.1} parent=5 // pred_fallthru
        _
      %p382 = scmp.le.s32.totalorder 2, %s17
      // Predicated region
      $region53: #{tpu_custom_call.1} parent=5 // pred_check
        %p383 = pneg %p382
      $region54: #{tpu_custom_call.1} parent=5 // pred_check_branch
        %385 = sbr.rel (%p383) target = $region56
      $region55: #{tpu_custom_call.1} parent=5 // pred_region
        %s386 = ssub.s32 %s17, 2
        // Predicated region
        $region57: #{tpu_custom_call.1} parent=55 // pred_check
          %p387 = pneg %p122
        $region58: #{tpu_custom_call.1} parent=55 // pred_check_branch
          %389 = sbr.rel (%p387) target = $region60
        $region59: #{tpu_custom_call.1} parent=55 // pred_region
          %s390 = sand.u32 %s107, 1
          %s391 = scalar_lea.sflag [#allocation4], %s390
          %s392 = sand.u32 %s107, 1
          %s393 = smul.addr %s392, 8
          %s394 = scalar_lea.vmem [#allocation7], %s393
          %395 = dma.done %s391, 128
        $region60: #{tpu_custom_call.1} parent=55 // pred_fallthru
          _
      $region56: #{tpu_custom_call.1} parent=5 // pred_fallthru
        _
    $region6: #{tpu_custom_call.1} parent=1 // loop_footer
      %s21 = sadd.s32 1, %s17
    $region7: #{tpu_custom_call.1} parent=1 // loop_footer_branch
      %16 = sbr.rel target = $region3
    $region8: #{tpu_custom_call.1} parent=1 // loop_exit
      _
    %396 = vsyncpa [#allocation3], 1
    %s397 = scalar_lea.sflag [#allocation3], 1
    %398 = vsyncpa %s397, 1
    %399 = vsyncpa [#allocation6], 1
    %s400 = scalar_lea.sflag [#allocation6], 1
    %401 = vsyncpa %s400, 1
    %402 = vsyncpa [#allocation4], 1
    %s403 = scalar_lea.sflag [#allocation4], 1
    %404 = vsyncpa %s403, 1

</llo_original>
